<compile_context>
chip_gen: v5e
topology: v5e:2x2
jax: 0.10.0
libtpu: 0.0.40
codegen_flags: <defaults>
</compile_context>

<pallas_src>
import functools

import jax
import jax.numpy as jnp
from jax.experimental import pallas as pl
from jax.experimental.pallas import tpu as pltpu

LANES = 128      # lane width (next multiple of 128 >= 100)
SUBLANES = 8     # f32 sublane granularity of a vreg
ROW_BLOCK = 1024 # rows per grid step, only used for very large batches


def _rosenbrock_kernel(x_ref, o_ref, *, n: int):
    """x_ref: (R, LANES) f32 in VMEM; o_ref: (R, 1) f32 in VMEM.

    Per row r: f(x_r) = sum_{i=0..n-2} (1 - x[i])^2 + 100*(x[i+1] - x[i]^2)^2
    """
    x = x_ref[...]

    # x_next[r, i] = x[r, (i + 1) % LANES]  (lane rotate on the XLU).
    # pltpu.roll requires a non-negative axis index.
    x_next = pltpu.roll(x, shift=LANES - 1, axis=1)

    # Validity mask for terms i = 0 .. n-2 (n is static -> constant mask).
    lane = jax.lax.broadcasted_iota(jnp.int32, x.shape, 1)
    valid = lane < (n - 1)

    term1 = (1.0 - x) * (1.0 - x)
    diff = x_next - x * x
    term2 = 100.0 * (diff * diff)

    # Keep the select (not multiply-by-mask) so pad lanes can never propagate
    # garbage; per-row reduce with keepdims -> lane-0 vector store.
    contrib = jnp.where(valid, term1 + term2, 0.0)
    o_ref[...] = jnp.sum(contrib, axis=-1, keepdims=True)


def _round_up(a: int, b: int) -> int:
    return (a + b - 1) // b * b


@jax.jit
def rosenbrock100_batched(xs: jax.Array) -> jax.Array:
    """xs: (B, n) with 2 <= n <= 128. Returns (B,) vector of f(xs[b])."""
    B, n = xs.shape
    assert 2 <= n <= LANES, "this kernel packs each x into a single 128-lane row"
    xf = xs.astype(jnp.float32)

    if B <= ROW_BLOCK:
        # Single invocation, no grid, no pipelining (whole slab << one VMEM tile).
        rows = _round_up(B, SUBLANES)
        x_pad = jnp.pad(xf, ((0, rows - B), (0, LANES - n)))
        out = pl.pallas_call(
            functools.partial(_rosenbrock_kernel, n=n),
            out_shape=jax.ShapeDtypeStruct((rows, 1), jnp.float32),
            in_specs=[pl.BlockSpec((rows, LANES), lambda: (0, 0))],
            out_specs=pl.BlockSpec((rows, 1), lambda: (0, 0)),
        )(x_pad)
    else:
        # Very large batch: tile over rows and let Mosaic shard the parallel
        # axis across TensorCores (2 TCs on v7x; no-op on v5e/v6e).
        rows = _round_up(B, ROW_BLOCK)
        x_pad = jnp.pad(xf, ((0, rows - B), (0, LANES - n)))
        out = pl.pallas_call(
            functools.partial(_rosenbrock_kernel, n=n),
            out_shape=jax.ShapeDtypeStruct((rows, 1), jnp.float32),
            grid=(rows // ROW_BLOCK,),
            in_specs=[pl.BlockSpec((ROW_BLOCK, LANES), lambda i: (i, 0))],
            out_specs=pl.BlockSpec((ROW_BLOCK, 1), lambda i: (i, 0)),
            compiler_params=pltpu.CompilerParams(
                dimension_semantics=("parallel",)),
        )(x_pad)
    return out[:B, 0]


@jax.jit
def rosenbrock100(x: jax.Array) -> jax.Array:
    """Module forward: x is a 1-D vector of length n (n=100). Returns scalar f(x)."""
    return rosenbrock100_batched(x[None, :])[0]


def _reference(x: jax.Array) -> jax.Array:
    x = x.astype(jnp.float32)
    x_prev = x[:-1]
    x_next = x[1:]
    term1 = (1.0 - x_prev) ** 2
    term2 = 100.0 * (x_next - x_prev**2) ** 2
    return jnp.sum(term1 + term2)


if __name__ == "__main__":
    key = jax.random.PRNGKey(0)
    n = 100  # module dimension

    # Single-vector forward (matches the PyTorch module semantics).
    x = jax.random.normal(key, (n,), dtype=jnp.float32)
    f_kernel = jax.block_until_ready(rosenbrock100(x))
    f_ref = jax.block_until_ready(_reference(x))
    assert jnp.allclose(f_kernel, f_ref, rtol=1e-5, atol=1e-3), (f_kernel, f_ref)

    # Batched evaluations (the variant where the Pallas kernel actually pays off).
    B = 64
    xs = jax.random.normal(jax.random.PRNGKey(0), (B, n), dtype=jnp.float32)
    fs_kernel = jax.block_until_ready(rosenbrock100_batched(xs))
    fs_ref = jax.vmap(_reference)(xs)
    assert jnp.allclose(fs_kernel, fs_ref, rtol=1e-5, atol=1e-3), (fs_kernel, fs_ref)

    print("KERNEL_OK")
</pallas_src>

<mosaic_0001>
module attributes {stable_mosaic.version = 11 : i64} {
  func.func @_rosenbrock_kernel(%arg0: memref<8x128xf32, #tpu.memory_space<vmem>>, %arg1: memref<8x1xf32, #tpu.memory_space<vmem>>) attributes {dimension_semantics = [], scalar_prefetch = 0 : i64, scratch_operands = 0 : i64, tpu.core_type = #tpu.core_type<tc>} {
    %c0 = arith.constant 0 : index
    %c0_0 = arith.constant 0 : index
    %0 = vector.load %arg0[%c0, %c0_0] : memref<8x128xf32, #tpu.memory_space<vmem>>, vector<8x128xf32>
    %c127_i32 = arith.constant 127 : i32
    %1 = tpu.dynamic_rotate %0 by %c127_i32 dim 1 : vector<8x128xf32>, i32 -> vector<8x128xf32>
    %2 = tpu.iota {dimensions = array<i32: 1>} : vector<8x128xi32>
    %c99_i32 = arith.constant 99 : i32
    %3 = vector.broadcast %c99_i32 : i32 to vector<8x128xi32>
    %4 = arith.cmpi slt, %2, %3 : vector<8x128xi32>
    %cst = arith.constant 1.000000e+00 : f32
    %5 = vector.broadcast %cst : f32 to vector<8x128xf32>
    %6 = arith.subf %5, %0 : vector<8x128xf32>
    %cst_1 = arith.constant 1.000000e+00 : f32
    %7 = vector.broadcast %cst_1 : f32 to vector<8x128xf32>
    %8 = arith.subf %7, %0 : vector<8x128xf32>
    %9 = arith.mulf %6, %8 : vector<8x128xf32>
    %10 = arith.mulf %0, %0 : vector<8x128xf32>
    %11 = arith.subf %1, %10 : vector<8x128xf32>
    %12 = arith.mulf %11, %11 : vector<8x128xf32>
    %cst_2 = arith.constant 1.000000e+02 : f32
    %13 = vector.broadcast %cst_2 : f32 to vector<8x128xf32>
    %14 = arith.mulf %13, %12 : vector<8x128xf32>
    %15 = arith.addf %9, %14 : vector<8x128xf32>
    %cst_3 = arith.constant 0.000000e+00 : f32
    %16 = vector.broadcast %cst_3 : f32 to vector<8x128xf32>
    %17 = arith.select %4, %15, %16 : vector<8x128xi1>, vector<8x128xf32>
    %cst_4 = arith.constant dense<0.000000e+00> : vector<8xf32>
    %18 = vector.multi_reduction <add>, %17, %cst_4 [1] : vector<8x128xf32> to vector<8xf32>
    %19 = vector.shape_cast %18 : vector<8xf32> to vector<8x1xf32>
    %c0_5 = arith.constant 0 : index
    %c0_6 = arith.constant 0 : index
    %20 = vector.load %arg1[%c0_5, %c0_6] : memref<8x1xf32, #tpu.memory_space<vmem>>, vector<8x1xf32>
    tpu.vector_store %arg1[%c0_5, %c0_6], %19 {strides = array<i32>} : memref<8x1xf32, #tpu.memory_space<vmem>>, vector<8x1xf32>,
    return
  }
}

</mosaic_0001>

<llo_original>
// kernel: rosenbrock100_batched.1
$region0: #{rosenbrock100_batched.1}
  #allocation0 [shape = 'u32[]', space=smem, size = 0x4, offset = 0x4, fixed_abs, tag = 'smem constant byte address 0x4 - core index']
  #allocation1 [shape = 'u32[72,128]{1,0:T(1,128)}', space=vmem, size = 0x9000, scoped, tag = 'internal scratch']
  %s0 = inlined_call_operand.vmem [shape: f32[8,128], index: 0, kind: input, shape index: {}]
  %s1 = inlined_call_operand.vmem [shape: f32[8,1], index: 1, kind: output, shape index: {}]
  %s2 = sld [smem:[#allocation0]]
  $region14: #{rosenbrock100_batched.1} parent=0
    _
  %s4 = ssub.s32 1, %s2
  %s5 = scalar_select 0, %s4, %s2
  // Predicated region
  $region2: #{rosenbrock100_batched.1} parent=0 // pred_check
    _
  $region3: #{rosenbrock100_batched.1} parent=0 // pred_check_branch
    %7 = sbr.rel (0) target = $region5
  $region4: #{rosenbrock100_batched.1} parent=0 // pred_region
    _
  $region5: #{rosenbrock100_batched.1} parent=0 // pred_fallthru
    _
  %v8 = vld [vmem:[%s0] sm:$0xff]
  %9 = vrot.lane.b32.xlu0 %v8, 127
  %v10 = vpop.permute.xlu0 %9
  %v11 = vlaneseq
  %v12 = vand.u32 %v11, 127
  %vm13 = vcmp.lt.s32.totalorder %v12, 99
  %v14 = vsub.f32 1.0, %v8
  %v15 = vmul.f32 %v14, %v14
  %v16 = vmul.f32 %v8, %v8
  %v17 = vsub.f32 %v10, %v16
  %v18 = vmul.f32 %v17, %v17
  %v19 = vmul.f32 %v18, 100.0
  %v20 = vadd.f32 %v15, %v19
  %v21 = vsel %vm13, %v20, 0.0
  %22 = vadd.xlane.f32.xlu0 %v21
  %v23 = vpop.xlane.xlu0 %22
  %vm24 = vcmask 7168
  %25 = vst.msk [vmem:[%s1] sm:$0xff] %vm24, %v23
  // Predicated region
  $region6: #{rosenbrock100_batched.1} parent=0 // pred_check
    _
  $region7: #{rosenbrock100_batched.1} parent=0 // pred_check_branch
    %27 = sbr.rel (0) target = $region9
  $region8: #{rosenbrock100_batched.1} parent=0 // pred_region
    _
  $region9: #{rosenbrock100_batched.1} parent=0 // pred_fallthru
    _
  // Predicated region
  $region10: #{rosenbrock100_batched.1} parent=0 // pred_check
    _
  $region11: #{rosenbrock100_batched.1} parent=0 // pred_check_branch
    %29 = sbr.rel (0) target = $region13
  $region12: #{rosenbrock100_batched.1} parent=0 // pred_region
    _
  $region13: #{rosenbrock100_batched.1} parent=0 // pred_fallthru
    _

</llo_original>
